<compile_context>
chip_gen: v7x
topology: tpu7x:2x2x1
jax: 0.10.0
libtpu: 0.0.40
codegen_flags: <defaults>
</compile_context>

<pallas_src>
import jax
import jax.numpy as jnp
from jax.experimental import pallas as pl
from jax.experimental.pallas import tpu as pltpu


def toynet_kernel(x_ref, gw_ref, o_ref):
    # x_ref: (TB, D)   gw_ref: (1, D)   o_ref: (TB, 1)
    xs = x_ref[...].astype(jnp.float32)          # matches (x * g).float() path
    gw = gw_ref[...].astype(jnp.float32)         # (1, D), broadcasts over batch
    # Fused scale + lane reduction (VPU mul + XLU reduce); MXU left idle.
    o_ref[...] = jnp.sum(xs * gw, axis=-1, keepdims=True)


def _pick_batch_tile(batch, dim, dtype_bytes=4, x_budget_bytes=24 << 20):
    """Largest multiple-of-8 batch tile whose double-buffered x tiles fit the
    budget (budget chosen to be safe on v5e/v6e/v7x)."""
    per_row = max(1, dim * dtype_bytes)
    tb = x_budget_bytes // (2 * per_row)          # 2 = double buffering
    tb = min(tb, 512)                             # ~85% of HBM roofline on v6e
    b_pad8 = ((batch + 7) // 8) * 8
    tb = min(tb, b_pad8)
    tb = max(8, (tb // 8) * 8)                    # (8, 128) sublane constraint
    return tb


def toynet_forward(x, gammas, weight):
    """x: (B, D); gammas: (1, D); weight: (1, D)  ->  (B,) float32."""
    B, D = x.shape

    # One-time fold of gammas into the weight (O(D), done by XLA outside the
    # kernel): (x*g)*w == x*(g*w) up to f32 associativity.
    gw = gammas.astype(jnp.float32) * weight.astype(jnp.float32)   # (1, D)

    tb = _pick_batch_tile(B, D, dtype_bytes=x.dtype.itemsize)
    num_tiles = -(-B // tb)
    b_pad = num_tiles * tb
    if b_pad != B:
        x = jnp.pad(x, ((0, b_pad - B), (0, 0)))   # zero rows -> zero outputs

    # VMEM budget: double-buffered x tiles + resident gw + outputs + headroom.
    needed = 2 * tb * D * x.dtype.itemsize + 2 * D * 4 + 2 * tb * 4
    vmem_bytes = int(min(48 << 20, max(16 << 20, needed + (4 << 20))))

    out = pl.pallas_call(
        toynet_kernel,
        out_shape=jax.ShapeDtypeStruct((b_pad, 1), jnp.float32),
        grid=(num_tiles,),
        in_specs=[
            pl.BlockSpec((tb, D), lambda i: (i, 0)),   # batch-tiled x
            pl.BlockSpec((1, D), lambda i: (0, 0)),    # gw stays VMEM-resident
        ],
        out_specs=pl.BlockSpec((tb, 1), lambda i: (i, 0)),
        compiler_params=pltpu.CompilerParams(
            dimension_semantics=("parallel",),          # batch tiles independent
            vmem_limit_bytes=vmem_bytes,
        ),
    )(x, gw)

    # torch .squeeze(): drops size-1 dims; for B>1 -> (B,)
    return jnp.squeeze(out[:B])


def make_toynet_params(dim, gammas_list, key):
    """Deterministic parameter construction mirroring ToyNet.__init__."""
    # gammas buffer: [gammas[:2] + gammas[2:] * (dim - 2)] -> shape (1, dim)
    g = gammas_list[:2] + gammas_list[2:] * (dim - 2)
    assert len(g) == dim, "gammas construction must yield length == dim"
    gammas = jnp.asarray([g], dtype=jnp.float32)          # (1, dim)

    # fc = Linear(dim, 1, bias=False): weight shape (1, dim),
    # torch default init is U(-1/sqrt(dim), 1/sqrt(dim)); then scaled.
    bound = 1.0 / jnp.sqrt(jnp.float32(dim))
    w0 = jax.random.uniform(key, (1, dim), jnp.float32, -bound, bound)
    weight = (0.01 / gammas) * w0                          # (1, dim)
    return gammas, weight


if __name__ == "__main__":
    key = jax.random.PRNGKey(0)
    k_x, k_w = jax.random.split(key)

    B, D = 2, 32
    gammas_list = [1.0, 2.0, 0.5]          # first two + last repeated (D-2) times

    gammas, weight = make_toynet_params(D, gammas_list, k_w)
    x = jax.random.normal(k_x, (B, D), dtype=jnp.float32)

    out = toynet_forward(x, gammas, weight)
    out = jax.block_until_ready(out)

    # reference check in plain JAX
    ref = jnp.squeeze((x * gammas).astype(jnp.float32) @ weight.T)
    assert out.shape == (B,), f"bad shape {out.shape}"
    assert jnp.allclose(out, ref, atol=1e-5, rtol=1e-5), "mismatch vs reference"

    print("KERNEL_OK")
</pallas_src>

<mosaic_0001>
module attributes {stable_mosaic.version = 11 : i64} {
  func.func @toynet_kernel(%arg0: i32, %arg1: memref<8x32xf32, #tpu.memory_space<vmem>>, %arg2: memref<1x32xf32, #tpu.memory_space<vmem>>, %arg3: memref<8x1xf32, #tpu.memory_space<vmem>>) attributes {dimension_semantics = [#tpu.dimension_semantics<parallel>], iteration_bounds = array<i64: 1>, scalar_prefetch = 0 : i64, scratch_operands = 0 : i64, tpu.core_type = #tpu.core_type<tc>, window_params = [{transform_indices = @transform_0, window_bounds = array<i64: 8, 32>}, {pipeline_mode = #tpu.pipeline_mode<synchronous>, transform_indices = @transform_1, window_bounds = array<i64: 1, 32>}, {transform_indices = @transform_2, window_bounds = array<i64: 8, 1>}]} {
    %c0 = arith.constant 0 : index
    %c0_0 = arith.constant 0 : index
    %0 = vector.load %arg1[%c0, %c0_0] : memref<8x32xf32, #tpu.memory_space<vmem>>, vector<8x32xf32>
    %c0_1 = arith.constant 0 : index
    %c0_2 = arith.constant 0 : index
    %1 = vector.load %arg2[%c0_1, %c0_2] : memref<1x32xf32, #tpu.memory_space<vmem>>, vector<1x32xf32>
    %2 = vector.broadcast %1 : vector<1x32xf32> to vector<8x32xf32>
    %3 = arith.mulf %0, %2 : vector<8x32xf32>
    %cst = arith.constant dense<0.000000e+00> : vector<8xf32>
    %4 = vector.multi_reduction <add>, %3, %cst [1] : vector<8x32xf32> to vector<8xf32>
    %5 = vector.shape_cast %4 : vector<8xf32> to vector<8x1xf32>
    %c0_3 = arith.constant 0 : index
    %c0_4 = arith.constant 0 : index
    %6 = vector.load %arg3[%c0_3, %c0_4] : memref<8x1xf32, #tpu.memory_space<vmem>>, vector<8x1xf32>
    tpu.vector_store %arg3[%c0_3, %c0_4], %5 {strides = array<i32>} : memref<8x1xf32, #tpu.memory_space<vmem>>, vector<8x1xf32>,
    return
  }
  func.func @transform_0(%arg0: i32) -> (i32, i32) {
    %c0_i32 = arith.constant 0 : i32
    %c0_i32_0 = arith.constant 0 : i32
    return %arg0, %c0_i32 : i32, i32
  }
  func.func @transform_1(%arg0: i32) -> (i32, i32) {
    %c0_i32 = arith.constant 0 : i32
    %c0_i32_0 = arith.constant 0 : i32
    %c0_i32_1 = arith.constant 0 : i32
    return %c0_i32, %c0_i32_0 : i32, i32
  }
  func.func @transform_2(%arg0: i32) -> (i32, i32) {
    %c0_i32 = arith.constant 0 : i32
    %c0_i32_0 = arith.constant 0 : i32
    return %arg0, %c0_i32 : i32, i32
  }
}

</mosaic_0001>

<llo_original>
// kernel: tpu_custom_call.1
$region0: #{tpu_custom_call.1}
  #allocation0 [shape = 'u32[]', space=smem, size = 0x4, offset = 0x4, fixed_abs, tag = 'smem constant byte address 0x4 - core index']
  #allocation1 [shape = 'u32[144,128]{1,0:T(1,128)}', space=vmem, size = 0x12000, scoped, tag = 'internal scratch']
  %s0 = inlined_call_operand.hbm [shape: f32[8,32], index: 0, kind: input, shape index: {}]
  %s1 = inlined_call_operand.vmem [shape: f32[1,32], index: 1, kind: input, shape index: {}]
  %s2 = inlined_call_operand.vmem [shape: f32[8,1], index: 2, kind: output, shape index: {}]
  %s3 = sld [smem:[#allocation0]]
  $region22: #{tpu_custom_call.1} parent=0
    _
  %s5 = ssub.s32 1, %s3
  %s6 = scalar_select 0, %s5, %s3
  $region1: #{tpu_custom_call.1} parent=0
    #allocation2 [shape = 'u8[4096]{0}', space=vmem, size = 0x1000, scoped, tag = 'input window, operand 0, single buffered']
    #allocation3 [shape = 's32[1]{0}', space=sflag, size = 0x4, scoped, tag = 'scoped memory for tpu_custom_call.1']
    %7 = vsyncpa [#allocation3], 0
    // Predicated region
    $region2: #{tpu_custom_call.1} parent=1 // pred_check
      _
    $region3: #{tpu_custom_call.1} parent=1 // pred_check_branch
      %9 = sbr.rel (0) target = $region5
    $region4: #{tpu_custom_call.1} parent=1 // pred_region
      %s11 = ssub.s32 128, 128
      %12 = vsyncadd [#allocation3], %s11
      %s14 = sshll.u32 [#allocation2], 4
      %s15 = int_to_ptr.vmem [resolvable:$true] %s14
      %17 = dma.hbm_to_vmem [thread:$0]  %s0, 128, %s15, [#allocation3]
    $region5: #{tpu_custom_call.1} parent=1 // pred_fallthru
      _
    // Predicated region
    $region6: #{tpu_custom_call.1} parent=1 // pred_check
      _
    $region7: #{tpu_custom_call.1} parent=1 // pred_check_branch
      %19 = sbr.rel (0) target = $region9
    $region8: #{tpu_custom_call.1} parent=1 // pred_region
      _
    $region9: #{tpu_custom_call.1} parent=1 // pred_fallthru
      _
    // Predicated region
    $region10: #{tpu_custom_call.1} parent=1 // pred_check
      _
    $region11: #{tpu_custom_call.1} parent=1 // pred_check_branch
      %21 = sbr.rel (0) target = $region13
    $region12: #{tpu_custom_call.1} parent=1 // pred_region
      %22 = dma.done [#allocation3], 128
    $region13: #{tpu_custom_call.1} parent=1 // pred_fallthru
      _
    %v23 = vld [vmem:[#allocation2] sm:$0xff]
    %v24 = vld [vmem:[%s1] sm:$0x1]
    %v26 = vlaneseq
    %v27 = vshrl.u32 %v26, 7
    %v28 = vsub.s32 0, %v27
    %v29 = vrot.slane %v24, %v28
    %v31 = vmul.f32 %v23, %v29
    %vm32 = vcmask 261120
    %v33 = vsel %vm32, %v31, 0.0
    %34 = vadd.xlane.f32.xlu0 %v33
    %v35 = vpop.xlane.xlu0 %34
    %vm36 = vcmask 7168
    %37 = vst.msk [vmem:[%s2] sm:$0xff] %vm36, %v35
    // Predicated region
    $region14: #{tpu_custom_call.1} parent=1 // pred_check
      _
    $region15: #{tpu_custom_call.1} parent=1 // pred_check_branch
      %39 = sbr.rel (0) target = $region17
    $region16: #{tpu_custom_call.1} parent=1 // pred_region
      _
    $region17: #{tpu_custom_call.1} parent=1 // pred_fallthru
      _
    // Predicated region
    $region18: #{tpu_custom_call.1} parent=1 // pred_check
      _
    $region19: #{tpu_custom_call.1} parent=1 // pred_check_branch
      %41 = sbr.rel (0) target = $region21
    $region20: #{tpu_custom_call.1} parent=1 // pred_region
      _
    $region21: #{tpu_custom_call.1} parent=1 // pred_fallthru
      _
    %42 = vsyncpa [#allocation3], 1

</llo_original>
